<compile_context>
chip_gen: v6e
topology: v6e:2x2x1
jax: 0.10.0
libtpu: 0.0.40
codegen_flags: <defaults>
</compile_context>

<pallas_src>
import jax
import jax.numpy as jnp
from jax.experimental import pallas as pl
from jax.experimental.pallas import tpu as pltpu


IGNORE_INDEX = -100  # torch.nn.CrossEntropyLoss default


def _cdiv(a, b):
    return -(-a // b)


def _round_up(a, b):
    return _cdiv(a, b) * b


def _sublane_multiple(itemsize):
    if itemsize >= 4:
        return 8
    if itemsize == 2:
        return 16
    return 32


_VMEM_CAP_CACHE = []


def _vmem_capacity_bytes():
    """Physical VMEM of the attached TPU; conservative (v7x) fallback."""
    if not _VMEM_CAP_CACHE:
        try:
            cap = int(pltpu.get_tpu_info().vmem_capacity_bytes)
        except Exception:
            cap = 64 * 1024 * 1024
        _VMEM_CAP_CACHE.append(cap)
    return _VMEM_CAP_CACHE[0]


def _pick_tile_rows(n, c, itemsize, budget_bytes):
    """Row tile for the (N, C) layout, budgeted on padded VMEM bytes."""
    c_pad = _round_up(c, 128)                   # lane padding
    sub = max(8, _sublane_multiple(itemsize))   # dtype sublane packing
    # input block + two f32 working copies + the lane-padded label column
    per_row = c_pad * itemsize + 2 * c_pad * 4 + 128 * 4
    tn = budget_bytes // per_row
    tn = max(sub, (tn // sub) * sub)
    return n if tn >= n else tn


def _pick_tile_cols(n, c, itemsize, budget_bytes):
    """Column tile for the transposed (C, N) layout (small-C heads)."""
    c_pad = _round_up(max(c, 1), 8)             # sublane padding
    per_col = c_pad * itemsize + 2 * c_pad * 4 + 8 * 4
    tn = budget_bytes // per_col
    tn = max(128, (tn // 128) * 128)            # lane axis multiple
    return n if tn >= n else tn


def _make_fused_ce_kernel(heads, tiles_per_core, ignore_index):
    """Kernel computing (loss_sum, valid_count) partials for several heads.

    Ref order: logits_0, labels_0, ..., out_0, ..., sum_acc_0, ..., cnt_acc_0...
    """
    n_heads = len(heads)

    def _accumulate(head, logits_ref, labels_ref, sum_ref, cnt_ref, t, mask_tail):
        n_h, c_h, tn_h = head["n"], head["c"], head["tn"]
        # cast in-kernel: HBM traffic stays at the input dtype width
        logits = logits_ref[...].astype(jnp.float32)
        labels = labels_ref[...]
        if head["layout"] == "cn":
            # logits (C, tn), labels (1, tn): examples on the 128-lane axis.
            shifted = logits - jnp.max(logits, axis=0, keepdims=True)
            lse = jnp.log(jnp.sum(jnp.exp(shifted), axis=0, keepdims=True))
            cls = jax.lax.broadcasted_iota(jnp.int32, (c_h, tn_h), 0)
            picked = jnp.sum(jnp.where(cls == labels, shifted, 0.0),
                             axis=0, keepdims=True)
            valid = labels != ignore_index                        # (1, tn)
            if mask_tail:
                pos = (jax.lax.broadcasted_iota(jnp.int32, (1, tn_h), 1)
                       + t * tn_h)
                valid = jnp.logical_and(valid, pos < n_h)
        else:
            # logits (tn, C), labels (tn, 1).
            shifted = logits - jnp.max(logits, axis=-1, keepdims=True)
            lse = jnp.log(jnp.sum(jnp.exp(shifted), axis=-1, keepdims=True))
            cls = jax.lax.broadcasted_iota(jnp.int32, (tn_h, c_h), 1)
            picked = jnp.sum(jnp.where(cls == labels, shifted, 0.0),
                             axis=-1, keepdims=True)
            valid = labels != ignore_index                        # (tn, 1)
            if mask_tail:
                pos = (jax.lax.broadcasted_iota(jnp.int32, (tn_h, 1), 0)
                       + t * tn_h)
                valid = jnp.logical_and(valid, pos < n_h)
        per_ex = jnp.where(valid, lse - picked, 0.0)   # rowmax cancels in lse-picked
        sum_ref[...] += jnp.sum(per_ex)
        cnt_ref[...] += jnp.sum(valid.astype(jnp.float32))

    def kernel(*refs):
        in_refs = refs[: 2 * n_heads]
        out_refs = refs[2 * n_heads: 3 * n_heads]
        sum_refs = refs[3 * n_heads: 4 * n_heads]
        cnt_refs = refs[4 * n_heads:]
        p = pl.program_id(0)               # core (parallel) axis
        i = pl.program_id(1)               # reduction (arbitrary) axis
        t = p * tiles_per_core + i         # global tile index

        @pl.when(i == 0)
        def _init():
            for h in range(n_heads):
                sum_refs[h][...] = jnp.zeros((1, 1), jnp.float32)
                cnt_refs[h][...] = jnp.zeros((1, 1), jnp.float32)

        for h in range(n_heads):
            head = heads[h]
            nt = head["n_tiles"]
            ragged = (head["n"] % head["tn"]) != 0
            lref, labref = in_refs[2 * h], in_refs[2 * h + 1]
            srf, crf = sum_refs[h], cnt_refs[h]

            if ragged:
                # full tiles: no ragged mask on the hot path
                @pl.when(t < nt - 1)
                def _full(head=head, lref=lref, labref=labref, srf=srf, crf=crf):
                    _accumulate(head, lref, labref, srf, crf, t, mask_tail=False)

                @pl.when(t == nt - 1)
                def _tail(head=head, lref=lref, labref=labref, srf=srf, crf=crf):
                    _accumulate(head, lref, labref, srf, crf, t, mask_tail=True)
            else:
                @pl.when(t < nt)
                def _full(head=head, lref=lref, labref=labref, srf=srf, crf=crf):
                    _accumulate(head, lref, labref, srf, crf, t, mask_tail=False)

        @pl.when(i == tiles_per_core - 1)
        def _finalize():
            lane = jax.lax.broadcasted_iota(jnp.int32, (1, 128), 1)
            for h in range(n_heads):
                # lane 0 = per-core loss sum, lane 1 = per-core valid count
                vals = jnp.where(lane == 0, sum_refs[h][...],
                                 jnp.where(lane == 1, cnt_refs[h][...], 0.0))
                out_refs[h][...] = vals.reshape(1, 1, 128)

    return kernel


def fused_cross_entropy_losses(pairs, *, tile_budget_bytes=None,
                               ignore_index=IGNORE_INDEX):
    """Mean cross-entropy (ignore_index-aware) for several (logits[N,C], labels[N])
    heads, fused into one pallas_call.  Returns a list of f32 scalars."""
    n_heads = len(pairs)

    # generation-aware budgets: v7x = 64 MiB physical VMEM, v5e/v6e = 128 MiB.
    vmem_cap = _vmem_capacity_bytes()
    if vmem_cap <= 64 * 1024 * 1024:
        total_block_budget = 6 * 1024 * 1024
        vmem_limit = 40 * 1024 * 1024
    else:
        total_block_budget = 12 * 1024 * 1024
        vmem_limit = 64 * 1024 * 1024
    if tile_budget_bytes is None:
        tile_budget_bytes = max(512 * 1024,
                                total_block_budget // max(1, n_heads))

    heads, args = [], []
    flops = trans = bytes_acc = 0
    for logits, labels in pairs:
        n, c = logits.shape
        itemsize = jnp.dtype(logits.dtype).itemsize
        labels = labels.astype(jnp.int32)
        if c < 128:
            # lane-dense layout for small-C heads: examples on the lane axis
            tn = _pick_tile_cols(n, c, itemsize, tile_budget_bytes)
            layout = "cn"
            args.append(logits.T)                 # (C, N)
            args.append(labels.reshape(1, n))     # (1, N)
        else:
            tn = _pick_tile_rows(n, c, itemsize, tile_budget_bytes)
            layout = "nc"
            args.append(logits)                   # (N, C)
            args.append(labels.reshape(n, 1))     # (N, 1)
        heads.append(dict(layout=layout, n=n, c=c, tn=tn, n_tiles=_cdiv(n, tn)))
        flops += 6 * n * c
        trans += n * c
        bytes_acc += n * c * itemsize + n * 4 + 1024

    grid_tiles = max(h["n_tiles"] for h in heads)
    # v7x 2-TC split: leading "parallel" axis, one (sum,count) partial per core
    # reduced in the wrapper.  Harmless (sequential) on 1-TC v5e/v6e.
    num_cores = 2 if grid_tiles >= 2 else 1
    tiles_per_core = _cdiv(grid_tiles, num_cores)

    in_specs = []
    for h in heads:
        nt, tn, c = h["n_tiles"], h["tn"], h["c"]
        if h["layout"] == "cn":
            idx_map = (lambda p, i, nt=nt:
                       (0, jnp.minimum(p * tiles_per_core + i, nt - 1)))
            in_specs.append(pl.BlockSpec((c, tn), idx_map))
            in_specs.append(pl.BlockSpec((1, tn), idx_map))
        else:
            idx_map = (lambda p, i, nt=nt:
                       (jnp.minimum(p * tiles_per_core + i, nt - 1), 0))
            in_specs.append(pl.BlockSpec((tn, c), idx_map))
            in_specs.append(pl.BlockSpec((tn, 1), idx_map))

    out_specs = tuple(pl.BlockSpec((1, 1, 128), lambda p, i: (p, 0, 0))
                      for _ in range(n_heads))
    out_shape = tuple(jax.ShapeDtypeStruct((num_cores, 1, 128), jnp.float32)
                      for _ in range(n_heads))
    scratch = ([pltpu.VMEM((1, 1), jnp.float32) for _ in range(n_heads)]     # sums
               + [pltpu.VMEM((1, 1), jnp.float32) for _ in range(n_heads)])  # counts

    kernel = _make_fused_ce_kernel(heads, tiles_per_core, ignore_index)

    outs = pl.pallas_call(
        kernel,
        out_shape=out_shape,
        grid_spec=pltpu.PrefetchScalarGridSpec(
            num_scalar_prefetch=0,
            grid=(num_cores, tiles_per_core),
            in_specs=in_specs,
            out_specs=out_specs,
            scratch_shapes=scratch),
        compiler_params=pltpu.CompilerParams(
            dimension_semantics=("parallel", "arbitrary"),
            vmem_limit_bytes=vmem_limit),
        cost_estimate=pl.CostEstimate(
            flops=int(flops),
            transcendentals=int(trans),
            bytes_accessed=int(bytes_acc)),
    )(*args)

    losses = []
    for o in outs:
        total = jnp.sum(o[:, 0, 0])
        count = jnp.sum(o[:, 0, 1])
        losses.append(total / count)   # mean over non-ignored labels
    return losses


class SSL_kbert_DANN_loss:
    """JAX/Pallas port of the PyTorch SSL_kbert_DANN_loss module (forward)."""

    def __init__(self, lambda_ssl, ssl_warmup_steps):
        self.lambda_ssl = float(lambda_ssl)
        if ssl_warmup_steps != 0:
            self.cur_lambda_ssl = 0.0
            self.ssl_warmup_steps = ssl_warmup_steps
            self.k = self.lambda_ssl / ssl_warmup_steps
        else:
            self.cur_lambda_ssl = self.lambda_ssl

    def __call__(self, class_preds, labels,
                 pivot_preds=None, pivot_labels=None,
                 all_dom_preds=None, all_dom_labels=None):
        has_pivot = pivot_labels is not None
        has_dom = all_dom_labels is not None

        pairs = [(class_preds, labels)]
        if has_pivot:
            pairs.append((pivot_preds, pivot_labels))
        if has_dom:
            pairs.append((all_dom_preds, all_dom_labels))

        # one fused kernel launch for all present heads
        losses = fused_cross_entropy_losses(pairs)
        class_loss = losses[0]
        idx = 1

        if has_pivot:
            ssl_loss = jnp.float32(self.cur_lambda_ssl) * losses[idx]
            idx += 1
            # TODO(synk): warmup counter is Python-side state (matches the
            # PyTorch module); under jax.jit carry cur_lambda_ssl as a traced
            # scalar argument instead.
            if self.cur_lambda_ssl < self.lambda_ssl:
                self.cur_lambda_ssl += self.k
        else:
            ssl_loss = jnp.float32(0.0)

        dom_loss = losses[idx] if has_dom else jnp.float32(0.0)

        loss = class_loss + ssl_loss + dom_loss
        if has_dom:
            return (loss, class_loss, ssl_loss, dom_loss)
        return (loss, class_loss, ssl_loss)


def _reference_ce(pred, labels, ignore_index=IGNORE_INDEX):
    pred = pred.astype(jnp.float32)
    logp = jax.nn.log_softmax(pred, axis=-1)
    valid = labels != ignore_index
    safe = jnp.where(valid, labels, 0)
    picked = jnp.take_along_axis(logp, safe[:, None], axis=-1)[:, 0]
    return -jnp.sum(jnp.where(valid, picked, 0.0)) / jnp.sum(valid)


if __name__ == "__main__":
    key = jax.random.PRNGKey(0)
    ks = jax.random.split(key, 12)

    # small synthetic shapes consistent with the module's loss heads
    n_cls, n_classes = 8, 4          # class head
    n_piv, n_pivots = 8, 6           # SSL pivot head
    n_dom, n_domains = 16, 2         # domain head (DANN)

    class_preds = jax.random.normal(ks[0], (n_cls, n_classes), jnp.float32)
    labels = jax.random.randint(ks[1], (n_cls,), 0, n_classes, jnp.int32)
    pivot_preds = jax.random.normal(ks[2], (n_piv, n_pivots), jnp.float32)
    pivot_labels = jax.random.randint(ks[3], (n_piv,), 0, n_pivots, jnp.int32)
    all_dom_preds = jax.random.normal(ks[4], (n_dom, n_domains), jnp.float32)
    all_dom_labels = jax.random.randint(ks[5], (n_dom,), 0, n_domains, jnp.int32)

    loss_mod = SSL_kbert_DANN_loss(lambda_ssl=0.5, ssl_warmup_steps=10)
    out = loss_mod(class_preds, labels,
                   pivot_preds, pivot_labels,
                   all_dom_preds, all_dom_labels)
    out = jax.block_until_ready(out)
    loss, class_loss, ssl_loss, dom_loss = out

    # correctness vs pure-JAX reference (lambda is 0.0 on the first call,
    # matching the PyTorch warmup schedule)
    ref_class = _reference_ce(class_preds, labels)
    ref_ssl = 0.0 * _reference_ce(pivot_preds, pivot_labels)
    ref_dom = _reference_ce(all_dom_preds, all_dom_labels)
    ref_loss = ref_class + ref_ssl + ref_dom
    assert jnp.allclose(class_loss, ref_class, atol=1e-5)
    assert jnp.allclose(ssl_loss, ref_ssl, atol=1e-5)
    assert jnp.allclose(dom_loss, ref_dom, atol=1e-5)
    assert jnp.allclose(loss, ref_loss, atol=1e-5)

    # variant without the domain head (3-tuple return)
    out3 = loss_mod(class_preds, labels, pivot_preds, pivot_labels)
    out3 = jax.block_until_ready(out3)
    assert len(out3) == 3

    # extra check: exercise the tiled multi-block path with a tiny tile budget:
    # ragged last tiles, different tile counts per head, both layouts
    # ((N,C) for C>=128, transposed (C,N) for small C), a bf16 head, the
    # 2-partial core split, and ignore_index=-100 handling.
    big_a = jax.random.normal(ks[6], (100, 256), jnp.float32)
    lab_a = jax.random.randint(ks[7], (100,), 0, 256, jnp.int32)
    big_b = jax.random.normal(ks[8], (37, 384), jnp.float32).astype(jnp.bfloat16)
    lab_b = jax.random.randint(ks[9], (37,), 0, 384, jnp.int32)
    big_c = jax.random.normal(ks[10], (300, 5), jnp.float32)
    lab_c = jax.random.randint(ks[11], (300,), 0, 5, jnp.int32)
    lab_c = lab_c.at[::7].set(IGNORE_INDEX)

    tiled = fused_cross_entropy_losses(
        [(big_a, lab_a), (big_b, lab_b), (big_c, lab_c)],
        tile_budget_bytes=16 * 1024)
    tiled = jax.block_until_ready(tiled)
    assert jnp.allclose(tiled[0], _reference_ce(big_a, lab_a), atol=1e-4)
    assert jnp.allclose(tiled[1], _reference_ce(big_b, lab_b), atol=1e-4)
    assert jnp.allclose(tiled[2], _reference_ce(big_c, lab_c), atol=1e-4)

    print("KERNEL_OK")
</pallas_src>

<mosaic_0001>
module attributes {stable_mosaic.version = 11 : i64} {
  func.func @kernel(%arg0: i32, %arg1: i32, %arg2: memref<4x8xf32, #tpu.memory_space<vmem>>, %arg3: memref<1x8xi32, #tpu.memory_space<vmem>>, %arg4: memref<6x8xf32, #tpu.memory_space<vmem>>, %arg5: memref<1x8xi32, #tpu.memory_space<vmem>>, %arg6: memref<2x16xf32, #tpu.memory_space<vmem>>, %arg7: memref<1x16xi32, #tpu.memory_space<vmem>>, %arg8: memref<1x1x128xf32, #tpu.memory_space<vmem>>, %arg9: memref<1x1x128xf32, #tpu.memory_space<vmem>>, %arg10: memref<1x1x128xf32, #tpu.memory_space<vmem>>, %arg11: memref<1x1xf32, #tpu.memory_space<vmem>>, %arg12: memref<1x1xf32, #tpu.memory_space<vmem>>, %arg13: memref<1x1xf32, #tpu.memory_space<vmem>>, %arg14: memref<1x1xf32, #tpu.memory_space<vmem>>, %arg15: memref<1x1xf32, #tpu.memory_space<vmem>>, %arg16: memref<1x1xf32, #tpu.memory_space<vmem>>) attributes {dimension_semantics = [#tpu.dimension_semantics<parallel>, #tpu.dimension_semantics<arbitrary>], iteration_bounds = array<i64: 1, 1>, scalar_prefetch = 0 : i64, scratch_operands = 6 : i64, tpu.core_type = #tpu.core_type<tc>, window_params = [{transform_indices = @transform_0, window_bounds = array<i64: 4, 8>}, {transform_indices = @transform_1, window_bounds = array<i64: 1, 8>}, {transform_indices = @transform_2, window_bounds = array<i64: 6, 8>}, {transform_indices = @transform_3, window_bounds = array<i64: 1, 8>}, {transform_indices = @transform_4, window_bounds = array<i64: 2, 16>}, {transform_indices = @transform_5, window_bounds = array<i64: 1, 16>}, {transform_indices = @transform_6, window_bounds = array<i64: 1, 1, 128>}, {transform_indices = @transform_7, window_bounds = array<i64: 1, 1, 128>}, {transform_indices = @transform_8, window_bounds = array<i64: 1, 1, 128>}]} {
    %c1_i32 = arith.constant 1 : i32
    %0 = arith.muli %arg0, %c1_i32 : i32
    %1 = arith.addi %0, %arg1 : i32
    %c0_i32 = arith.constant 0 : i32
    %2 = arith.cmpi eq, %arg1, %c0_i32 : i32
    %3 = arith.extui %2 : i1 to i32
    %c0_i32_0 = arith.constant 0 : i32
    %4 = arith.cmpi ne, %3, %c0_i32_0 : i32
    scf.if %4 {
      %cst = arith.constant 0.000000e+00 : f32
      %17 = vector.broadcast %cst : f32 to vector<1x1xf32>
      %c0 = arith.constant 0 : index
      %c0_9 = arith.constant 0 : index
      %18 = vector.load %arg11[%c0, %c0_9] : memref<1x1xf32, #tpu.memory_space<vmem>>, vector<1x1xf32>
      tpu.vector_store %arg11[%c0, %c0_9], %17 {strides = array<i32>} : memref<1x1xf32, #tpu.memory_space<vmem>>, vector<1x1xf32>,
      %cst_10 = arith.constant 0.000000e+00 : f32
      %19 = vector.broadcast %cst_10 : f32 to vector<1x1xf32>
      %c0_11 = arith.constant 0 : index
      %c0_12 = arith.constant 0 : index
      %20 = vector.load %arg14[%c0_11, %c0_12] : memref<1x1xf32, #tpu.memory_space<vmem>>, vector<1x1xf32>
      tpu.vector_store %arg14[%c0_11, %c0_12], %19 {strides = array<i32>} : memref<1x1xf32, #tpu.memory_space<vmem>>, vector<1x1xf32>,
      %cst_13 = arith.constant 0.000000e+00 : f32
      %21 = vector.broadcast %cst_13 : f32 to vector<1x1xf32>
      %c0_14 = arith.constant 0 : index
      %c0_15 = arith.constant 0 : index
      %22 = vector.load %arg12[%c0_14, %c0_15] : memref<1x1xf32, #tpu.memory_space<vmem>>, vector<1x1xf32>
      tpu.vector_store %arg12[%c0_14, %c0_15], %21 {strides = array<i32>} : memref<1x1xf32, #tpu.memory_space<vmem>>, vector<1x1xf32>,
      %cst_16 = arith.constant 0.000000e+00 : f32
      %23 = vector.broadcast %cst_16 : f32 to vector<1x1xf32>
      %c0_17 = arith.constant 0 : index
      %c0_18 = arith.constant 0 : index
      %24 = vector.load %arg15[%c0_17, %c0_18] : memref<1x1xf32, #tpu.memory_space<vmem>>, vector<1x1xf32>
      tpu.vector_store %arg15[%c0_17, %c0_18], %23 {strides = array<i32>} : memref<1x1xf32, #tpu.memory_space<vmem>>, vector<1x1xf32>,
      %cst_19 = arith.constant 0.000000e+00 : f32
      %25 = vector.broadcast %cst_19 : f32 to vector<1x1xf32>
      %c0_20 = arith.constant 0 : index
      %c0_21 = arith.constant 0 : index
      %26 = vector.load %arg13[%c0_20, %c0_21] : memref<1x1xf32, #tpu.memory_space<vmem>>, vector<1x1xf32>
      tpu.vector_store %arg13[%c0_20, %c0_21], %25 {strides = array<i32>} : memref<1x1xf32, #tpu.memory_space<vmem>>, vector<1x1xf32>,
      %cst_22 = arith.constant 0.000000e+00 : f32
      %27 = vector.broadcast %cst_22 : f32 to vector<1x1xf32>
      %c0_23 = arith.constant 0 : index
      %c0_24 = arith.constant 0 : index
      %28 = vector.load %arg16[%c0_23, %c0_24] : memref<1x1xf32, #tpu.memory_space<vmem>>, vector<1x1xf32>
      tpu.vector_store %arg16[%c0_23, %c0_24], %27 {strides = array<i32>} : memref<1x1xf32, #tpu.memory_space<vmem>>, vector<1x1xf32>,
    } else {
    }
    %c1_i32_1 = arith.constant 1 : i32
    %5 = arith.cmpi slt, %1, %c1_i32_1 : i32
    %6 = arith.extui %5 : i1 to i32
    %c0_i32_2 = arith.constant 0 : i32
    %7 = arith.cmpi ne, %6, %c0_i32_2 : i32
    scf.if %7 {
      %c0 = arith.constant 0 : index
      %c0_9 = arith.constant 0 : index
      %17 = vector.load %arg2[%c0, %c0_9] : memref<4x8xf32, #tpu.memory_space<vmem>>, vector<4x8xf32>
      %c0_10 = arith.constant 0 : index
      %c0_11 = arith.constant 0 : index
      %18 = vector.load %arg3[%c0_10, %c0_11] : memref<1x8xi32, #tpu.memory_space<vmem>>, vector<1x8xi32>
      %cst = arith.constant dense<0xFF800000> : vector<8xf32>
      %19 = vector.multi_reduction <maximumf>, %17, %cst [0] : vector<4x8xf32> to vector<8xf32>
      %20 = vector.shape_cast %19 : vector<8xf32> to vector<1x8xf32>
      %21 = vector.broadcast %20 : vector<1x8xf32> to vector<4x8xf32>
      %22 = arith.subf %17, %21 : vector<4x8xf32>
      %23 = math.exp %22 : vector<4x8xf32>
      %cst_12 = arith.constant dense<0.000000e+00> : vector<8xf32>
      %24 = vector.multi_reduction <add>, %23, %cst_12 [0] : vector<4x8xf32> to vector<8xf32>
      %25 = vector.shape_cast %24 : vector<8xf32> to vector<1x8xf32>
      %26 = math.log %25 : vector<1x8xf32>
      %27 = tpu.iota {dimensions = array<i32: 0>} : vector<4x8xi32>
      %28 = vector.broadcast %18 : vector<1x8xi32> to vector<4x8xi32>
      %29 = arith.cmpi eq, %27, %28 : vector<4x8xi32>
      %cst_13 = arith.constant 0.000000e+00 : f32
      %30 = vector.broadcast %cst_13 : f32 to vector<4x8xf32>
      %31 = arith.select %29, %22, %30 : vector<4x8xi1>, vector<4x8xf32>
      %cst_14 = arith.constant dense<0.000000e+00> : vector<8xf32>
      %32 = vector.multi_reduction <add>, %31, %cst_14 [0] : vector<4x8xf32> to vector<8xf32>
      %33 = vector.shape_cast %32 : vector<8xf32> to vector<1x8xf32>
      %c-100_i32 = arith.constant -100 : i32
      %34 = vector.broadcast %c-100_i32 : i32 to vector<1x8xi32>
      %35 = arith.cmpi ne, %18, %34 : vector<1x8xi32>
      %36 = arith.subf %26, %33 : vector<1x8xf32>
      %cst_15 = arith.constant 0.000000e+00 : f32
      %37 = vector.broadcast %cst_15 : f32 to vector<1x8xf32>
      %38 = arith.select %35, %36, %37 : vector<1x8xi1>, vector<1x8xf32>
      %c0_16 = arith.constant 0 : index
      %c0_17 = arith.constant 0 : index
      %39 = vector.load %arg11[%c0_16, %c0_17] : memref<1x1xf32, #tpu.memory_space<vmem>>, vector<1x1xf32>
      %40 = vector.shape_cast %38 : vector<1x8xf32> to vector<1x1x8xf32>
      %cst_18 = arith.constant dense<0.000000e+00> : vector<1xf32>
      %41 = vector.multi_reduction <add>, %40, %cst_18 [1, 2] : vector<1x1x8xf32> to vector<1xf32>
      %42 = vector.shape_cast %41 : vector<1xf32> to vector<1x1x1xf32>
      %43 = vector.extract %42[0, 0, 0] : f32 from vector<1x1x1xf32>
      %44 = vector.broadcast %43 : f32 to vector<1x1xf32>
      %45 = arith.addf %39, %44 : vector<1x1xf32>
      %c0_19 = arith.constant 0 : index
      %c0_20 = arith.constant 0 : index
      %46 = vector.load %arg11[%c0_19, %c0_20] : memref<1x1xf32, #tpu.memory_space<vmem>>, vector<1x1xf32>
      tpu.vector_store %arg11[%c0_19, %c0_20], %45 {strides = array<i32>} : memref<1x1xf32, #tpu.memory_space<vmem>>, vector<1x1xf32>,
      %c0_21 = arith.constant 0 : index
      %c0_22 = arith.constant 0 : index
      %47 = vector.load %arg14[%c0_21, %c0_22] : memref<1x1xf32, #tpu.memory_space<vmem>>, vector<1x1xf32>
      %48 = arith.extui %35 : vector<1x8xi1> to vector<1x8xi32>
      %49 = arith.sitofp %48 : vector<1x8xi32> to vector<1x8xf32>
      %50 = vector.shape_cast %49 : vector<1x8xf32> to vector<1x1x8xf32>
      %cst_23 = arith.constant dense<0.000000e+00> : vector<1xf32>
      %51 = vector.multi_reduction <add>, %50, %cst_23 [1, 2] : vector<1x1x8xf32> to vector<1xf32>
      %52 = vector.shape_cast %51 : vector<1xf32> to vector<1x1x1xf32>
      %53 = vector.extract %52[0, 0, 0] : f32 from vector<1x1x1xf32>
      %54 = vector.broadcast %53 : f32 to vector<1x1xf32>
      %55 = arith.addf %47, %54 : vector<1x1xf32>
      %c0_24 = arith.constant 0 : index
      %c0_25 = arith.constant 0 : index
      %56 = vector.load %arg14[%c0_24, %c0_25] : memref<1x1xf32, #tpu.memory_space<vmem>>, vector<1x1xf32>
      tpu.vector_store %arg14[%c0_24, %c0_25], %55 {strides = array<i32>} : memref<1x1xf32, #tpu.memory_space<vmem>>, vector<1x1xf32>,
    } else {
    }
    %c1_i32_3 = arith.constant 1 : i32
    %8 = arith.cmpi slt, %1, %c1_i32_3 : i32
    %9 = arith.extui %8 : i1 to i32
    %c0_i32_4 = arith.constant 0 : i32
    %10 = arith.cmpi ne, %9, %c0_i32_4 : i32
    scf.if %10 {
      %c0 = arith.constant 0 : index
      %c0_9 = arith.constant 0 : index
      %17 = vector.load %arg4[%c0, %c0_9] : memref<6x8xf32, #tpu.memory_space<vmem>>, vector<6x8xf32>
      %c0_10 = arith.constant 0 : index
      %c0_11 = arith.constant 0 : index
      %18 = vector.load %arg5[%c0_10, %c0_11] : memref<1x8xi32, #tpu.memory_space<vmem>>, vector<1x8xi32>
      %cst = arith.constant dense<0xFF800000> : vector<8xf32>
      %19 = vector.multi_reduction <maximumf>, %17, %cst [0] : vector<6x8xf32> to vector<8xf32>
      %20 = vector.shape_cast %19 : vector<8xf32> to vector<1x8xf32>
      %21 = vector.broadcast %20 : vector<1x8xf32> to vector<6x8xf32>
      %22 = arith.subf %17, %21 : vector<6x8xf32>
      %23 = math.exp %22 : vector<6x8xf32>
      %cst_12 = arith.constant dense<0.000000e+00> : vector<8xf32>
      %24 = vector.multi_reduction <add>, %23, %cst_12 [0] : vector<6x8xf32> to vector<8xf32>
      %25 = vector.shape_cast %24 : vector<8xf32> to vector<1x8xf32>
      %26 = math.log %25 : vector<1x8xf32>
      %27 = tpu.iota {dimensions = array<i32: 0>} : vector<6x8xi32>
      %28 = vector.broadcast %18 : vector<1x8xi32> to vector<6x8xi32>
      %29 = arith.cmpi eq, %27, %28 : vector<6x8xi32>
      %cst_13 = arith.constant 0.000000e+00 : f32
      %30 = vector.broadcast %cst_13 : f32 to vector<6x8xf32>
      %31 = arith.select %29, %22, %30 : vector<6x8xi1>, vector<6x8xf32>
      %cst_14 = arith.constant dense<0.000000e+00> : vector<8xf32>
      %32 = vector.multi_reduction <add>, %31, %cst_14 [0] : vector<6x8xf32> to vector<8xf32>
      %33 = vector.shape_cast %32 : vector<8xf32> to vector<1x8xf32>
      %c-100_i32 = arith.constant -100 : i32
      %34 = vector.broadcast %c-100_i32 : i32 to vector<1x8xi32>
      %35 = arith.cmpi ne, %18, %34 : vector<1x8xi32>
      %36 = arith.subf %26, %33 : vector<1x8xf32>
      %cst_15 = arith.constant 0.000000e+00 : f32
      %37 = vector.broadcast %cst_15 : f32 to vector<1x8xf32>
      %38 = arith.select %35, %36, %37 : vector<1x8xi1>, vector<1x8xf32>
      %c0_16 = arith.constant 0 : index
      %c0_17 = arith.constant 0 : index
      %39 = vector.load %arg12[%c0_16, %c0_17] : memref<1x1xf32, #tpu.memory_space<vmem>>, vector<1x1xf32>
      %40 = vector.shape_cast %38 : vector<1x8xf32> to vector<1x1x8xf32>
      %cst_18 = arith.constant dense<0.000000e+00> : vector<1xf32>
      %41 = vector.multi_reduction <add>, %40, %cst_18 [1, 2] : vector<1x1x8xf32> to vector<1xf32>
      %42 = vector.shape_cast %41 : vector<1xf32> to vector<1x1x1xf32>
      %43 = vector.extract %42[0, 0, 0] : f32 from vector<1x1x1xf32>
      %44 = vector.broadcast %43 : f32 to vector<1x1xf32>
      %45 = arith.addf %39, %44 : vector<1x1xf32>
      %c0_19 = arith.constant 0 : index
      %c0_20 = arith.constant 0 : index
      %46 = vector.load %arg12[%c0_19, %c0_20] : memref<1x1xf32, #tpu.memory_space<vmem>>, vector<1x1xf32>
      tpu.vector_store %arg12[%c0_19, %c0_20], %45 {strides = array<i32>} : memref<1x1xf32, #tpu.memory_space<vmem>>, vector<1x1xf32>,
      %c0_21 = arith.constant 0 : index
      %c0_22 = arith.constant 0 : index
      %47 = vector.load %arg15[%c0_21, %c0_22] : memref<1x1xf32, #tpu.memory_space<vmem>>, vector<1x1xf32>
      %48 = arith.extui %35 : vector<1x8xi1> to vector<1x8xi32>
      %49 = arith.sitofp %48 : vector<1x8xi32> to vector<1x8xf32>
      %50 = vector.shape_cast %49 : vector<1x8xf32> to vector<1x1x8xf32>
      %cst_23 = arith.constant dense<0.000000e+00> : vector<1xf32>
      %51 = vector.multi_reduction <add>, %50, %cst_23 [1, 2] : vector<1x1x8xf32> to vector<1xf32>
      %52 = vector.shape_cast %51 : vector<1xf32> to vector<1x1x1xf32>
      %53 = vector.extract %52[0, 0, 0] : f32 from vector<1x1x1xf32>
      %54 = vector.broadcast %53 : f32 to vector<1x1xf32>
      %55 = arith.addf %47, %54 : vector<1x1xf32>
      %c0_24 = arith.constant 0 : index
      %c0_25 = arith.constant 0 : index
      %56 = vector.load %arg15[%c0_24, %c0_25] : memref<1x1xf32, #tpu.memory_space<vmem>>, vector<1x1xf32>
      tpu.vector_store %arg15[%c0_24, %c0_25], %55 {strides = array<i32>} : memref<1x1xf32, #tpu.memory_space<vmem>>, vector<1x1xf32>,
    } else {
    }
    %c1_i32_5 = arith.constant 1 : i32
    %11 = arith.cmpi slt, %1, %c1_i32_5 : i32
    %12 = arith.extui %11 : i1 to i32
    %c0_i32_6 = arith.constant 0 : i32
    %13 = arith.cmpi ne, %12, %c0_i32_6 : i32
    scf.if %13 {
      %c0 = arith.constant 0 : index
      %c0_9 = arith.constant 0 : index
      %17 = vector.load %arg6[%c0, %c0_9] : memref<2x16xf32, #tpu.memory_space<vmem>>, vector<2x16xf32>
      %c0_10 = arith.constant 0 : index
      %c0_11 = arith.constant 0 : index
      %18 = vector.load %arg7[%c0_10, %c0_11] : memref<1x16xi32, #tpu.memory_space<vmem>>, vector<1x16xi32>
      %cst = arith.constant dense<0xFF800000> : vector<16xf32>
      %19 = vector.multi_reduction <maximumf>, %17, %cst [0] : vector<2x16xf32> to vector<16xf32>
      %20 = vector.shape_cast %19 : vector<16xf32> to vector<1x16xf32>
      %21 = vector.broadcast %20 : vector<1x16xf32> to vector<2x16xf32>
      %22 = arith.subf %17, %21 : vector<2x16xf32>
      %23 = math.exp %22 : vector<2x16xf32>
      %cst_12 = arith.constant dense<0.000000e+00> : vector<16xf32>
      %24 = vector.multi_reduction <add>, %23, %cst_12 [0] : vector<2x16xf32> to vector<16xf32>
      %25 = vector.shape_cast %24 : vector<16xf32> to vector<1x16xf32>
      %26 = math.log %25 : vector<1x16xf32>
      %27 = tpu.iota {dimensions = array<i32: 0>} : vector<2x16xi32>
      %28 = vector.broadcast %18 : vector<1x16xi32> to vector<2x16xi32>
      %29 = arith.cmpi eq, %27, %28 : vector<2x16xi32>
      %cst_13 = arith.constant 0.000000e+00 : f32
      %30 = vector.broadcast %cst_13 : f32 to vector<2x16xf32>
      %31 = arith.select %29, %22, %30 : vector<2x16xi1>, vector<2x16xf32>
      %cst_14 = arith.constant dense<0.000000e+00> : vector<16xf32>
      %32 = vector.multi_reduction <add>, %31, %cst_14 [0] : vector<2x16xf32> to vector<16xf32>
      %33 = vector.shape_cast %32 : vector<16xf32> to vector<1x16xf32>
      %c-100_i32 = arith.constant -100 : i32
      %34 = vector.broadcast %c-100_i32 : i32 to vector<1x16xi32>
      %35 = arith.cmpi ne, %18, %34 : vector<1x16xi32>
      %36 = arith.subf %26, %33 : vector<1x16xf32>
      %cst_15 = arith.constant 0.000000e+00 : f32
      %37 = vector.broadcast %cst_15 : f32 to vector<1x16xf32>
      %38 = arith.select %35, %36, %37 : vector<1x16xi1>, vector<1x16xf32>
      %c0_16 = arith.constant 0 : index
      %c0_17 = arith.constant 0 : index
      %39 = vector.load %arg13[%c0_16, %c0_17] : memref<1x1xf32, #tpu.memory_space<vmem>>, vector<1x1xf32>
      %40 = vector.shape_cast %38 : vector<1x16xf32> to vector<1x1x16xf32>
      %cst_18 = arith.constant dense<0.000000e+00> : vector<1xf32>
      %41 = vector.multi_reduction <add>, %40, %cst_18 [1, 2] : vector<1x1x16xf32> to vector<1xf32>
      %42 = vector.shape_cast %41 : vector<1xf32> to vector<1x1x1xf32>
      %43 = vector.extract %42[0, 0, 0] : f32 from vector<1x1x1xf32>
      %44 = vector.broadcast %43 : f32 to vector<1x1xf32>
      %45 = arith.addf %39, %44 : vector<1x1xf32>
      %c0_19 = arith.constant 0 : index
      %c0_20 = arith.constant 0 : index
      %46 = vector.load %arg13[%c0_19, %c0_20] : memref<1x1xf32, #tpu.memory_space<vmem>>, vector<1x1xf32>
      tpu.vector_store %arg13[%c0_19, %c0_20], %45 {strides = array<i32>} : memref<1x1xf32, #tpu.memory_space<vmem>>, vector<1x1xf32>,
      %c0_21 = arith.constant 0 : index
      %c0_22 = arith.constant 0 : index
      %47 = vector.load %arg16[%c0_21, %c0_22] : memref<1x1xf32, #tpu.memory_space<vmem>>, vector<1x1xf32>
      %48 = arith.extui %35 : vector<1x16xi1> to vector<1x16xi32>
      %49 = arith.sitofp %48 : vector<1x16xi32> to vector<1x16xf32>
      %50 = vector.shape_cast %49 : vector<1x16xf32> to vector<1x1x16xf32>
      %cst_23 = arith.constant dense<0.000000e+00> : vector<1xf32>
      %51 = vector.multi_reduction <add>, %50, %cst_23 [1, 2] : vector<1x1x16xf32> to vector<1xf32>
      %52 = vector.shape_cast %51 : vector<1xf32> to vector<1x1x1xf32>
      %53 = vector.extract %52[0, 0, 0] : f32 from vector<1x1x1xf32>
      %54 = vector.broadcast %53 : f32 to vector<1x1xf32>
      %55 = arith.addf %47, %54 : vector<1x1xf32>
      %c0_24 = arith.constant 0 : index
      %c0_25 = arith.constant 0 : index
      %56 = vector.load %arg16[%c0_24, %c0_25] : memref<1x1xf32, #tpu.memory_space<vmem>>, vector<1x1xf32>
      tpu.vector_store %arg16[%c0_24, %c0_25], %55 {strides = array<i32>} : memref<1x1xf32, #tpu.memory_space<vmem>>, vector<1x1xf32>,
    } else {
    }
    %c0_i32_7 = arith.constant 0 : i32
    %14 = arith.cmpi eq, %arg1, %c0_i32_7 : i32
    %15 = arith.extui %14 : i1 to i32
    %c0_i32_8 = arith.constant 0 : i32
    %16 = arith.cmpi ne, %15, %c0_i32_8 : i32
    scf.if %16 {
      %17 = tpu.iota {dimensions = array<i32: 1>} : vector<1x128xi32>
      %c0_i32_9 = arith.constant 0 : i32
      %18 = vector.broadcast %c0_i32_9 : i32 to vector<1x128xi32>
      %19 = arith.cmpi eq, %17, %18 : vector<1x128xi32>
      %c0 = arith.constant 0 : index
      %c0_10 = arith.constant 0 : index
      %20 = vector.load %arg11[%c0, %c0_10] : memref<1x1xf32, #tpu.memory_space<vmem>>, vector<1x1xf32>
      %c1_i32_11 = arith.constant 1 : i32
      %21 = vector.broadcast %c1_i32_11 : i32 to vector<1x128xi32>
      %22 = arith.cmpi eq, %17, %21 : vector<1x128xi32>
      %c0_12 = arith.constant 0 : index
      %c0_13 = arith.constant 0 : index
      %23 = vector.load %arg14[%c0_12, %c0_13] : memref<1x1xf32, #tpu.memory_space<vmem>>, vector<1x1xf32>
      %cst = arith.constant 0.000000e+00 : f32
      %24 = vector.shape_cast %23 : vector<1x1xf32> to vector<1x1xf32>
      %25 = vector.broadcast %24 : vector<1x1xf32> to vector<1x128xf32>
      %26 = vector.broadcast %cst : f32 to vector<1x128xf32>
      %27 = arith.select %22, %25, %26 : vector<1x128xi1>, vector<1x128xf32>
      %28 = vector.shape_cast %20 : vector<1x1xf32> to vector<1x1xf32>
      %29 = vector.broadcast %28 : vector<1x1xf32> to vector<1x128xf32>
      %30 = arith.select %19, %29, %27 : vector<1x128xi1>, vector<1x128xf32>
      %31 = vector.shape_cast %30 : vector<1x128xf32> to vector<1x1x128xf32>
      %c0_14 = arith.constant 0 : index
      %c0_15 = arith.constant 0 : index
      %c0_16 = arith.constant 0 : index
      %32 = vector.load %arg8[%c0_14, %c0_15, %c0_16] : memref<1x1x128xf32, #tpu.memory_space<vmem>>, vector<1x1x128xf32>
      tpu.vector_store %arg8[%c0_14, %c0_15, %c0_16], %31 {strides = array<i32>} : memref<1x1x128xf32, #tpu.memory_space<vmem>>, vector<1x1x128xf32>,
      %c0_i32_17 = arith.constant 0 : i32
      %33 = vector.broadcast %c0_i32_17 : i32 to vector<1x128xi32>
      %34 = arith.cmpi eq, %17, %33 : vector<1x128xi32>
      %c0_18 = arith.constant 0 : index
      %c0_19 = arith.constant 0 : index
      %35 = vector.load %arg12[%c0_18, %c0_19] : memref<1x1xf32, #tpu.memory_space<vmem>>, vector<1x1xf32>
      %c1_i32_20 = arith.constant 1 : i32
      %36 = vector.broadcast %c1_i32_20 : i32 to vector<1x128xi32>
      %37 = arith.cmpi eq, %17, %36 : vector<1x128xi32>
      %c0_21 = arith.constant 0 : index
      %c0_22 = arith.constant 0 : index
      %38 = vector.load %arg15[%c0_21, %c0_22] : memref<1x1xf32, #tpu.memory_space<vmem>>, vector<1x1xf32>
      %cst_23 = arith.constant 0.000000e+00 : f32
      %39 = vector.shape_cast %38 : vector<1x1xf32> to vector<1x1xf32>
      %40 = vector.broadcast %39 : vector<1x1xf32> to vector<1x128xf32>
      %41 = vector.broadcast %cst_23 : f32 to vector<1x128xf32>
      %42 = arith.select %37, %40, %41 : vector<1x128xi1>, vector<1x128xf32>
      %43 = vector.shape_cast %35 : vector<1x1xf32> to vector<1x1xf32>
      %44 = vector.broadcast %43 : vector<1x1xf32> to vector<1x128xf32>
      %45 = arith.select %34, %44, %42 : vector<1x128xi1>, vector<1x128xf32>
      %46 = vector.shape_cast %45 : vector<1x128xf32> to vector<1x1x128xf32>
      %c0_24 = arith.constant 0 : index
      %c0_25 = arith.constant 0 : index
      %c0_26 = arith.constant 0 : index
      %47 = vector.load %arg9[%c0_24, %c0_25, %c0_26] : memref<1x1x128xf32, #tpu.memory_space<vmem>>, vector<1x1x128xf32>
      tpu.vector_store %arg9[%c0_24, %c0_25, %c0_26], %46 {strides = array<i32>} : memref<1x1x128xf32, #tpu.memory_space<vmem>>, vector<1x1x128xf32>,
      %c0_i32_27 = arith.constant 0 : i32
      %48 = vector.broadcast %c0_i32_27 : i32 to vector<1x128xi32>
      %49 = arith.cmpi eq, %17, %48 : vector<1x128xi32>
      %c0_28 = arith.constant 0 : index
      %c0_29 = arith.constant 0 : index
      %50 = vector.load %arg13[%c0_28, %c0_29] : memref<1x1xf32, #tpu.memory_space<vmem>>, vector<1x1xf32>
      %c1_i32_30 = arith.constant 1 : i32
      %51 = vector.broadcast %c1_i32_30 : i32 to vector<1x128xi32>
      %52 = arith.cmpi eq, %17, %51 : vector<1x128xi32>
      %c0_31 = arith.constant 0 : index
      %c0_32 = arith.constant 0 : index
      %53 = vector.load %arg16[%c0_31, %c0_32] : memref<1x1xf32, #tpu.memory_space<vmem>>, vector<1x1xf32>
      %cst_33 = arith.constant 0.000000e+00 : f32
      %54 = vector.shape_cast %53 : vector<1x1xf32> to vector<1x1xf32>
      %55 = vector.broadcast %54 : vector<1x1xf32> to vector<1x128xf32>
      %56 = vector.broadcast %cst_33 : f32 to vector<1x128xf32>
      %57 = arith.select %52, %55, %56 : vector<1x128xi1>, vector<1x128xf32>
      %58 = vector.shape_cast %50 : vector<1x1xf32> to vector<1x1xf32>
      %59 = vector.broadcast %58 : vector<1x1xf32> to vector<1x128xf32>
      %60 = arith.select %49, %59, %57 : vector<1x128xi1>, vector<1x128xf32>
      %61 = vector.shape_cast %60 : vector<1x128xf32> to vector<1x1x128xf32>
      %c0_34 = arith.constant 0 : index
      %c0_35 = arith.constant 0 : index
      %c0_36 = arith.constant 0 : index
      %62 = vector.load %arg10[%c0_34, %c0_35, %c0_36] : memref<1x1x128xf32, #tpu.memory_space<vmem>>, vector<1x1x128xf32>
      tpu.vector_store %arg10[%c0_34, %c0_35, %c0_36], %61 {strides = array<i32>} : memref<1x1x128xf32, #tpu.memory_space<vmem>>, vector<1x1x128xf32>,
    } else {
    }
    return
  }
  func.func @transform_0(%arg0: i32, %arg1: i32) -> (i32, i32) {
    %c1_i32 = arith.constant 1 : i32
    %0 = arith.muli %arg0, %c1_i32 : i32
    %1 = arith.addi %0, %arg1 : i32
    %c0_i32 = arith.constant 0 : i32
    %2 = arith.minsi %1, %c0_i32 : i32
    %c0_i32_0 = arith.constant 0 : i32
    %c0_i32_1 = arith.constant 0 : i32
    return %c0_i32_0, %2 : i32, i32
  }
  func.func @transform_1(%arg0: i32, %arg1: i32) -> (i32, i32) {
    %c1_i32 = arith.constant 1 : i32
    %0 = arith.muli %arg0, %c1_i32 : i32
    %1 = arith.addi %0, %arg1 : i32
    %c0_i32 = arith.constant 0 : i32
    %2 = arith.minsi %1, %c0_i32 : i32
    %c0_i32_0 = arith.constant 0 : i32
    %c0_i32_1 = arith.constant 0 : i32
    return %c0_i32_0, %2 : i32, i32
  }
  func.func @transform_2(%arg0: i32, %arg1: i32) -> (i32, i32) {
    %c1_i32 = arith.constant 1 : i32
    %0 = arith.muli %arg0, %c1_i32 : i32
    %1 = arith.addi %0, %arg1 : i32
    %c0_i32 = arith.constant 0 : i32
    %2 = arith.minsi %1, %c0_i32 : i32
    %c0_i32_0 = arith.constant 0 : i32
    %c0_i32_1 = arith.constant 0 : i32
    return %c0_i32_0, %2 : i32, i32
  }
  func.func @transform_3(%arg0: i32, %arg1: i32) -> (i32, i32) {
    %c1_i32 = arith.constant 1 : i32
    %0 = arith.muli %arg0, %c1_i32 : i32
    %1 = arith.addi %0, %arg1 : i32
    %c0_i32 = arith.constant 0 : i32
    %2 = arith.minsi %1, %c0_i32 : i32
    %c0_i32_0 = arith.constant 0 : i32
    %c0_i32_1 = arith.constant 0 : i32
    return %c0_i32_0, %2 : i32, i32
  }
  func.func @transform_4(%arg0: i32, %arg1: i32) -> (i32, i32) {
    %c1_i32 = arith.constant 1 : i32
    %0 = arith.muli %arg0, %c1_i32 : i32
    %1 = arith.addi %0, %arg1 : i32
    %c0_i32 = arith.constant 0 : i32
    %2 = arith.minsi %1, %c0_i32 : i32
    %c0_i32_0 = arith.constant 0 : i32
    %c0_i32_1 = arith.constant 0 : i32
    return %c0_i32_0, %2 : i32, i32
  }
  func.func @transform_5(%arg0: i32, %arg1: i32) -> (i32, i32) {
    %c1_i32 = arith.constant 1 : i32
    %0 = arith.muli %arg0, %c1_i32 : i32
    %1 = arith.addi %0, %arg1 : i32
    %c0_i32 = arith.constant 0 : i32
    %2 = arith.minsi %1, %c0_i32 : i32
    %c0_i32_0 = arith.constant 0 : i32
    %c0_i32_1 = arith.constant 0 : i32
    return %c0_i32_0, %2 : i32, i32
  }
  func.func @transform_6(%arg0: i32, %arg1: i32) -> (i32, i32, i32) {
    %c0_i32 = arith.constant 0 : i32
    %c0_i32_0 = arith.constant 0 : i32
    %c0_i32_1 = arith.constant 0 : i32
    return %arg0, %c0_i32, %c0_i32_0 : i32, i32, i32
  }
  func.func @transform_7(%arg0: i32, %arg1: i32) -> (i32, i32, i32) {
    %c0_i32 = arith.constant 0 : i32
    %c0_i32_0 = arith.constant 0 : i32
    %c0_i32_1 = arith.constant 0 : i32
    return %arg0, %c0_i32, %c0_i32_0 : i32, i32, i32
  }
  func.func @transform_8(%arg0: i32, %arg1: i32) -> (i32, i32, i32) {
    %c0_i32 = arith.constant 0 : i32
    %c0_i32_0 = arith.constant 0 : i32
    %c0_i32_1 = arith.constant 0 : i32
    return %arg0, %c0_i32, %c0_i32_0 : i32, i32, i32
  }
}

</mosaic_0001>

<llo_original>
// kernel: tpu_custom_call.1
$region0: #{tpu_custom_call.1}
  #allocation0 [shape = 'u32[]', space=smem, size = 0x4, offset = 0x4, fixed_abs, tag = 'smem constant byte address 0x4 - core index']
  #allocation1 [shape = 'u32[144,128]{1,0:T(1,128)}', space=vmem, size = 0x12000, scoped, tag = 'internal scratch']
  #allocation2 [shape = 'f32[1,1]{1,0:T(1,128)}', space=vmem, size = 0x200, scoped, tag = 'scratch operand']
  #allocation3 [shape = 'f32[1,1]{1,0:T(1,128)}', space=vmem, size = 0x200, scoped, tag = 'scratch operand']
  #allocation4 [shape = 'f32[1,1]{1,0:T(1,128)}', space=vmem, size = 0x200, scoped, tag = 'scratch operand']
  #allocation5 [shape = 'f32[1,1]{1,0:T(1,128)}', space=vmem, size = 0x200, scoped, tag = 'scratch operand']
  #allocation6 [shape = 'f32[1,1]{1,0:T(1,128)}', space=vmem, size = 0x200, scoped, tag = 'scratch operand']
  #allocation7 [shape = 'f32[1,1]{1,0:T(1,128)}', space=vmem, size = 0x200, scoped, tag = 'scratch operand']
  %s0 = inlined_call_operand.hbm [shape: f32[4,8], index: 0, kind: input, shape index: {}]
  %s1 = inlined_call_operand.vmem [shape: s32[1,8], index: 1, kind: input, shape index: {}]
  %s2 = inlined_call_operand.hbm [shape: f32[6,8], index: 2, kind: input, shape index: {}]
  %s3 = inlined_call_operand.vmem [shape: s32[1,8], index: 3, kind: input, shape index: {}]
  %s4 = inlined_call_operand.vmem [shape: f32[2,16], index: 4, kind: input, shape index: {}]
  %s5 = inlined_call_operand.vmem [shape: s32[1,16], index: 5, kind: input, shape index: {}]
  %s6 = inlined_call_operand.hbm [shape: f32[1,1,128], index: 6, kind: output, shape index: {0}]
  %s7 = inlined_call_operand.hbm [shape: f32[1,1,128], index: 7, kind: output, shape index: {1}]
  %s8 = inlined_call_operand.hbm [shape: f32[1,1,128], index: 8, kind: output, shape index: {2}]
  %9 = xla_tuple %s6, %s7, %s8
  %s10 = sld [smem:[#allocation0]]
  $region70: #{tpu_custom_call.1} parent=0
    _
  %s12 = ssub.s32 1, %s10
  %s13 = scalar_select 0, %s12, %s10
  $region1: #{tpu_custom_call.1} parent=0
    #allocation8 [shape = 'u8[2048]{0}', space=vmem, size = 0x800, scoped, tag = 'input window, operand 0, single buffered']
    #allocation9 [shape = 's32[1]{0}', space=sflag, size = 0x4, scoped, tag = 'scoped memory for tpu_custom_call.1']
    #allocation10 [shape = 's32[1]{0}', space=sflag, size = 0x4, scoped, tag = 'scoped memory for tpu_custom_call.1']
    #allocation11 [shape = 'u8[4096]{0}', space=vmem, size = 0x1000, scoped, tag = 'input window, operand 2, single buffered']
    #allocation12 [shape = 's32[1]{0}', space=sflag, size = 0x4, scoped, tag = 'scoped memory for tpu_custom_call.1']
    #allocation13 [shape = 'u8[512]{0}', space=vmem, size = 0x400, scoped, tag = 'output window, operand 0, single buffered']
    #allocation14 [shape = 'u8[512]{0}', space=vmem, size = 0x400, scoped, tag = 'output window, operand 1, single buffered']
    #allocation15 [shape = 's32[1]{0}', space=sflag, size = 0x4, scoped, tag = 'scoped memory for tpu_custom_call.1']
    #allocation16 [shape = 'u8[512]{0}', space=vmem, size = 0x400, scoped, tag = 'output window, operand 2, single buffered']
    %14 = vsyncpa [#allocation9], 0
    %15 = vsyncpa [#allocation12], 0
    %16 = vsyncpa [#allocation10], 0
    %17 = vsyncpa [#allocation15], 0
    // Predicated region
    $region2: #{tpu_custom_call.1} parent=1 // pred_check
      _
    $region3: #{tpu_custom_call.1} parent=1 // pred_check_branch
      %19 = sbr.rel (0) target = $region5
    $region4: #{tpu_custom_call.1} parent=1 // pred_region
      %s20 = sadd.s32 0, 0
      %p21 = scmp.lt.s32.totalorder %s20, 0
      %s22 = scalar_select %p21, %s20, 0
      %s24 = ssub.s32 64, 64
      %25 = vsyncadd [#allocation9], %s24
      %s26 = smul.addr %s22, 64
      %s27 = scalar_lea.hbm %s0, %s26
      %s29 = sshll.u32 [#allocation8], 4
      %s30 = int_to_ptr.vmem [resolvable:$true] %s29
      %32 = dma.hbm_to_vmem [thread:$0]  %s27, 64, %s30, [#allocation9]
    $region5: #{tpu_custom_call.1} parent=1 // pred_fallthru
      _
    // Predicated region
    $region6: #{tpu_custom_call.1} parent=1 // pred_check
      _
    $region7: #{tpu_custom_call.1} parent=1 // pred_check_branch
      %34 = sbr.rel (0) target = $region9
    $region8: #{tpu_custom_call.1} parent=1 // pred_region
      %s35 = sadd.s32 0, 0
      %p36 = scmp.lt.s32.totalorder %s35, 0
      %s37 = scalar_select %p36, %s35, 0
      %p38 = scmp.lt.s32.totalorder %s37, 0
      %s39 = scalar_select %p38, %s37, 0
      %s40 = scalar_lea.vmem %s1, %s39
      %s41 = sadd.s32 0, 0
      %p42 = scmp.lt.s32.totalorder %s41, 0
      %s43 = scalar_select %p42, %s41, 0
    $region9: #{tpu_custom_call.1} parent=1 // pred_fallthru
      _
    // Predicated region
    $region10: #{tpu_custom_call.1} parent=1 // pred_check
      _
    $region11: #{tpu_custom_call.1} parent=1 // pred_check_branch
      %45 = sbr.rel (0) target = $region13
    $region12: #{tpu_custom_call.1} parent=1 // pred_region
      %s46 = sadd.s32 0, 0
      %p47 = scmp.lt.s32.totalorder %s46, 0
      %s48 = scalar_select %p47, %s46, 0
      %s50 = ssub.s32 128, 128
      %51 = vsyncadd [#allocation12], %s50
      %s52 = smul.addr %s48, 128
      %s53 = scalar_lea.hbm %s2, %s52
      %s55 = sshll.u32 [#allocation11], 4
      %s56 = int_to_ptr.vmem [resolvable:$true] %s55
      %58 = dma.hbm_to_vmem [thread:$0]  %s53, 128, %s56, [#allocation12]
    $region13: #{tpu_custom_call.1} parent=1 // pred_fallthru
      _
    // Predicated region
    $region14: #{tpu_custom_call.1} parent=1 // pred_check
      _
    $region15: #{tpu_custom_call.1} parent=1 // pred_check_branch
      %60 = sbr.rel (0) target = $region17
    $region16: #{tpu_custom_call.1} parent=1 // pred_region
      %s61 = sadd.s32 0, 0
      %p62 = scmp.lt.s32.totalorder %s61, 0
      %s63 = scalar_select %p62, %s61, 0
      %p64 = scmp.lt.s32.totalorder %s63, 0
      %s65 = scalar_select %p64, %s63, 0
      %s66 = scalar_lea.vmem %s3, %s65
      %s67 = sadd.s32 0, 0
      %p68 = scmp.lt.s32.totalorder %s67, 0
      %s69 = scalar_select %p68, %s67, 0
    $region17: #{tpu_custom_call.1} parent=1 // pred_fallthru
      _
    // Predicated region
    $region18: #{tpu_custom_call.1} parent=1 // pred_check
      _
    $region19: #{tpu_custom_call.1} parent=1 // pred_check_branch
      %71 = sbr.rel (0) target = $region21
    $region20: #{tpu_custom_call.1} parent=1 // pred_region
      %s72 = sadd.s32 0, 0
      %p73 = scmp.lt.s32.totalorder %s72, 0
      %s74 = scalar_select %p73, %s72, 0
      %p75 = scmp.lt.s32.totalorder %s74, 0
      %s76 = scalar_select %p75, %s74, 0
      %s77 = smul.addr %s76, 2
      %s78 = scalar_lea.vmem %s4, %s77
      %s79 = sadd.s32 0, 0
      %p80 = scmp.lt.s32.totalorder %s79, 0
      %s81 = scalar_select %p80, %s79, 0
    $region21: #{tpu_custom_call.1} parent=1 // pred_fallthru
      _
    // Predicated region
    $region22: #{tpu_custom_call.1} parent=1 // pred_check
      _
    $region23: #{tpu_custom_call.1} parent=1 // pred_check_branch
      %83 = sbr.rel (0) target = $region25
    $region24: #{tpu_custom_call.1} parent=1 // pred_region
      %s84 = sadd.s32 0, 0
      %p85 = scmp.lt.s32.totalorder %s84, 0
      %s86 = scalar_select %p85, %s84, 0
      %p87 = scmp.lt.s32.totalorder %s86, 0
      %s88 = scalar_select %p87, %s86, 0
      %s89 = scalar_lea.vmem %s5, %s88
      %s90 = sadd.s32 0, 0
      %p91 = scmp.lt.s32.totalorder %s90, 0
      %s92 = scalar_select %p91, %s90, 0
    $region25: #{tpu_custom_call.1} parent=1 // pred_fallthru
      _
    // Predicated region
    $region26: #{tpu_custom_call.1} parent=1 // pred_check
      _
    $region27: #{tpu_custom_call.1} parent=1 // pred_check_branch
      %94 = sbr.rel (0) target = $region29
    $region28: #{tpu_custom_call.1} parent=1 // pred_region
      %95 = dma.done [#allocation9], 64
    $region29: #{tpu_custom_call.1} parent=1 // pred_fallthru
      _
    // Predicated region
    $region30: #{tpu_custom_call.1} parent=1 // pred_check
      _
    $region31: #{tpu_custom_call.1} parent=1 // pred_check_branch
      %97 = sbr.rel (0) target = $region33
    $region32: #{tpu_custom_call.1} parent=1 // pred_region
      %98 = dma.done [#allocation12], 128
    $region33: #{tpu_custom_call.1} parent=1 // pred_fallthru
      _
    %s99 = sadd.s32 0, 0
    %p100 = scmp.lt.s32.totalorder %s99, 0
    %s101 = scalar_select %p100, %s99, 0
    %p102 = scmp.lt.s32.totalorder %s101, 0
    %s103 = scalar_select %p102, %s101, 0
    %s104 = scalar_lea.vmem %s1, %s103
    %s105 = sadd.s32 0, 0
    %p106 = scmp.lt.s32.totalorder %s105, 0
    %s107 = scalar_select %p106, %s105, 0
    %p108 = scmp.lt.s32.totalorder %s107, 0
    %s109 = scalar_select %p108, %s107, 0
    %s110 = scalar_lea.vmem %s3, %s109
    %s111 = sadd.s32 0, 0
    %p112 = scmp.lt.s32.totalorder %s111, 0
    %s113 = scalar_select %p112, %s111, 0
    %p114 = scmp.lt.s32.totalorder %s113, 0
    %s115 = scalar_select %p114, %s113, 0
    %s116 = smul.addr %s115, 2
    %s117 = scalar_lea.vmem %s4, %s116
    %s118 = sadd.s32 0, 0
    %p119 = scmp.lt.s32.totalorder %s118, 0
    %s120 = scalar_select %p119, %s118, 0
    %p121 = scmp.lt.s32.totalorder %s120, 0
    %s122 = scalar_select %p121, %s120, 0
    %s123 = scalar_lea.vmem %s5, %s122
    %s124 = sadd.s32 0, 0
    %p125 = scmp.lt.s32.totalorder %s124, 0
    %s126 = scalar_select %p125, %s124, 0
    %s127 = sadd.s32 0, 0
    %p128 = scmp.lt.s32.totalorder %s127, 0
    %s129 = scalar_select %p128, %s127, 0
    %p130 = scmp.lt.s32.totalorder %s129, 0
    %s131 = scalar_select %p130, %s129, 0
    %s132 = scalar_lea.vmem %s1, %s131
    %s133 = sadd.s32 0, 0
    %p134 = scmp.lt.s32.totalorder %s133, 0
    %s135 = scalar_select %p134, %s133, 0
    %s136 = sadd.s32 0, 0
    %p137 = scmp.lt.s32.totalorder %s136, 0
    %s138 = scalar_select %p137, %s136, 0
    %s139 = sadd.s32 0, 0
    %p140 = scmp.lt.s32.totalorder %s139, 0
    %s141 = scalar_select %p140, %s139, 0
    %p142 = scmp.lt.s32.totalorder %s141, 0
    %s143 = scalar_select %p142, %s141, 0
    %s144 = scalar_lea.vmem %s3, %s143
    %s145 = sadd.s32 0, 0
    %p146 = scmp.lt.s32.totalorder %s145, 0
    %s147 = scalar_select %p146, %s145, 0
    %s148 = sadd.s32 0, 0
    %p149 = scmp.lt.s32.totalorder %s148, 0
    %s150 = scalar_select %p149, %s148, 0
    %p151 = scmp.lt.s32.totalorder %s150, 0
    %s152 = scalar_select %p151, %s150, 0
    %s153 = smul.addr %s152, 2
    %s154 = scalar_lea.vmem %s4, %s153
    %s155 = sadd.s32 0, 0
    %p156 = scmp.lt.s32.totalorder %s155, 0
    %s157 = scalar_select %p156, %s155, 0
    %s158 = sadd.s32 0, 0
    %p159 = scmp.lt.s32.totalorder %s158, 0
    %s160 = scalar_select %p159, %s158, 0
    %p161 = scmp.lt.s32.totalorder %s160, 0
    %s162 = scalar_select %p161, %s160, 0
    %s163 = scalar_lea.vmem %s5, %s162
    %s164 = sadd.s32 0, 0
    %p165 = scmp.lt.s32.totalorder %s164, 0
    %s166 = scalar_select %p165, %s164, 0
    %s167 = sadd.s32 0, 0
    %p168 = scmp.eq.s32.totalorder 0, 0
    // Predicated region
    $region34: #{tpu_custom_call.1} parent=1 // pred_check
      %p169 = pneg %p168
    $region35: #{tpu_custom_call.1} parent=1 // pred_check_branch
      %171 = sbr.rel (%p169) target = $region37
    $region36: #{tpu_custom_call.1} parent=1 // pred_region
      %vm172 = vcmask 0
      %173 = vst.msk [vmem:[#allocation2] sm:$0x1] %vm172, 0.0
      %174 = vst.msk [vmem:[#allocation5] sm:$0x1] %vm172, 0.0
      %175 = vst.msk [vmem:[#allocation3] sm:$0x1] %vm172, 0.0
      %176 = vst.msk [vmem:[#allocation6] sm:$0x1] %vm172, 0.0
      %177 = vst.msk [vmem:[#allocation4] sm:$0x1] %vm172, 0.0
      %178 = vst.msk [vmem:[#allocation7] sm:$0x1] %vm172, 0.0
    $region37: #{tpu_custom_call.1} parent=1 // pred_fallthru
      _
    %p179 = scmp.lt.s32.totalorder %s167, 1
    // Predicated region
    $region38: #{tpu_custom_call.1} parent=1 // pred_check
      %p180 = pneg %p179
    $region39: #{tpu_custom_call.1} parent=1 // pred_check_branch
      %182 = sbr.rel (%p180) target = $region41
    $region40: #{tpu_custom_call.1} parent=1 // pred_region
      %v183 = vld [vmem:[#allocation8] sm:$0xf]
      %v184 = vld [vmem:[%s132] sm:$0x1]
      %vm185 = vcmask 60416
      %v186 = vsel %vm185, %v183, -inf
      %v187 = vrot.slane %v186, 4
      %v188 = vmax.f32 %v186, %v187
      %v189 = vrot.slane %v188, 2
      %v190 = vmax.f32 %v188, %v189
      %v191 = vrot.slane %v190, 1
      %v192 = vmax.f32 %v190, %v191
      %v193 = vsub.f32 %v183, %v192
      %v194 = vmul.f32 %v193, 1.442695
      %v195 = vpow.pop %v194
      %v196 = vsel %vm185, %v195, 0.0
      %v197 = vrot.slane %v196, 4
      %v198 = vadd.f32 %v196, %v197
      %v199 = vrot.slane %v198, 2
      %v200 = vadd.f32 %v198, %v199
      %v201 = vrot.slane %v200, 1
      %v202 = vadd.f32 %v200, %v201
      %v203 = vlog2.pop %v202
      %v204 = vmul.f32 %v203, 0.6931472
      %v205 = vlaneseq
      %v206 = vshrl.u32 %v205, 7
      %v207 = vlaneseq
      %v208 = vshrl.u32 %v207, 7
      %v209 = vsub.s32 0, %v208
      %v210 = vrot.slane %v184, %v209
      %vm211 = vcmp.eq.s32.totalorder %v206, %v210
      %v212 = vsel %vm211, %v193, 0.0
      %v213 = vsel %vm185, %v212, 0.0
      %v214 = vrot.slane %v213, 4
      %v215 = vadd.f32 %v213, %v214
      %v216 = vrot.slane %v215, 2
      %v217 = vadd.f32 %v215, %v216
      %v218 = vrot.slane %v217, 1
      %v219 = vadd.f32 %v217, %v218
      %vm220 = vcmp.ne.s32.totalorder %v184, 4294967196
      %v221 = vsub.f32 %v204, %v219
      %v222 = vsel %vm220, %v221, 0.0
      %v223 = vld [vmem:[#allocation2] sm:$0x1]
      %vm224 = vcmask 57344
      %v225 = vsel %vm224, %v222, 0.0
      %226 = vadd.xlane.f32.xlu0 %v225
      %v227 = vpop.xlane.xlu0 %226
      %v228 = vrot.slane %v227, 4
      %v229 = vadd.f32 %v227, %v228
      %v230 = vrot.slane %v229, 2
      %v231 = vadd.f32 %v229, %v230
      %v232 = vrot.slane %v231, 1
      %v233 = vadd.f32 %v231, %v232
      %s234 = vtos %v233
      %v235 = vstv %s234
      %v236 = vadd.f32 %v223, %v235
      %vm237 = vcmask 0
      %238 = vst.msk [vmem:[#allocation2] sm:$0x1] %vm237, %v236
      %v239 = vld [vmem:[#allocation5] sm:$0x1]
      %v240 = vsel %vm220, 1, 0
      %v241 = vcvt.s32.f32 %v240
      %v242 = vsel %vm224, %v241, 0.0
      %243 = vadd.xlane.f32.xlu0 %v242
      %v244 = vpop.xlane.xlu0 %243
      %v245 = vrot.slane %v244, 4
      %v246 = vadd.f32 %v244, %v245
      %v247 = vrot.slane %v246, 2
      %v248 = vadd.f32 %v246, %v247
      %v249 = vrot.slane %v248, 1
      %v250 = vadd.f32 %v248, %v249
      %s251 = vtos %v250
      %v252 = vstv %s251
      %v253 = vadd.f32 %v239, %v252
      %254 = vst.msk [vmem:[#allocation5] sm:$0x1] %vm237, %v253
      %v255 = vld [vmem:[#allocation11] sm:$0x3f]
      %v256 = vld [vmem:[%s144] sm:$0x1]
      %vm257 = vcmask 62464
      %v258 = vsel %vm257, %v255, -inf
      %v259 = vrot.slane %v258, 4
      %v260 = vmax.f32 %v258, %v259
      %v261 = vrot.slane %v260, 2
      %v262 = vmax.f32 %v260, %v261
      %v263 = vrot.slane %v262, 1
      %v264 = vmax.f32 %v262, %v263
      %v265 = vsub.f32 %v255, %v264
      %v266 = vmul.f32 %v265, 1.442695
      %v267 = vpow.pop %v266
      %v268 = vsel %vm257, %v267, 0.0
      %v269 = vrot.slane %v268, 4
      %v270 = vadd.f32 %v268, %v269
      %v271 = vrot.slane %v270, 2
      %v272 = vadd.f32 %v270, %v271
      %v273 = vrot.slane %v272, 1
      %v274 = vadd.f32 %v272, %v273
      %v275 = vlog2.pop %v274
      %v276 = vmul.f32 %v275, 0.6931472
      %v277 = vlaneseq
      %v278 = vshrl.u32 %v277, 7
      %v279 = vsub.s32 0, %v278
      %v280 = vrot.slane %v256, %v279
      %vm281 = vcmp.eq.s32.totalorder %v206, %v280
      %v282 = vsel %vm281, %v265, 0.0
      %v283 = vsel %vm257, %v282, 0.0
      %v284 = vrot.slane %v283, 4
      %v285 = vadd.f32 %v283, %v284
      %v286 = vrot.slane %v285, 2
      %v287 = vadd.f32 %v285, %v286
      %v288 = vrot.slane %v287, 1
      %v289 = vadd.f32 %v287, %v288
      %vm290 = vcmp.ne.s32.totalorder %v256, 4294967196
      %v291 = vsub.f32 %v276, %v289
      %v292 = vsel %vm290, %v291, 0.0
      %v293 = vld [vmem:[#allocation3] sm:$0x1]
      %v294 = vsel %vm224, %v292, 0.0
      %295 = vadd.xlane.f32.xlu0 %v294
      %v296 = vpop.xlane.xlu0 %295
      %v297 = vrot.slane %v296, 4
      %v298 = vadd.f32 %v296, %v297
      %v299 = vrot.slane %v298, 2
      %v300 = vadd.f32 %v298, %v299
      %v301 = vrot.slane %v300, 1
      %v302 = vadd.f32 %v300, %v301
      %s303 = vtos %v302
      %v304 = vstv %s303
      %v305 = vadd.f32 %v293, %v304
      %306 = vst.msk [vmem:[#allocation3] sm:$0x1] %vm237, %v305
      %v307 = vld [vmem:[#allocation6] sm:$0x1]
      %v308 = vsel %vm290, 1, 0
      %v309 = vcvt.s32.f32 %v308
      %v310 = vsel %vm224, %v309, 0.0
      %311 = vadd.xlane.f32.xlu0 %v310
      %v312 = vpop.xlane.xlu0 %311
      %v313 = vrot.slane %v312, 4
      %v314 = vadd.f32 %v312, %v313
      %v315 = vrot.slane %v314, 2
      %v316 = vadd.f32 %v314, %v315
      %v317 = vrot.slane %v316, 1
      %v318 = vadd.f32 %v316, %v317
      %s319 = vtos %v318
      %v320 = vstv %s319
      %v321 = vadd.f32 %v307, %v320
      %322 = vst.msk [vmem:[#allocation6] sm:$0x1] %vm237, %v321
      %v323 = vld [vmem:[%s154] sm:$0x3]
      %v324 = vld [vmem:[%s163] sm:$0x1]
      %vm325 = vcmask 123904
      %v326 = vsel %vm325, %v323, -inf
      %v327 = vrot.slane %v326, 4
      %v328 = vmax.f32 %v326, %v327
      %v329 = vrot.slane %v328, 2
      %v330 = vmax.f32 %v328, %v329
      %v331 = vrot.slane %v330, 1
      %v332 = vmax.f32 %v330, %v331
      %v333 = vsub.f32 %v323, %v332
      %v334 = vmul.f32 %v333, 1.442695
      %v335 = vpow.pop %v334
      %v336 = vsel %vm325, %v335, 0.0
      %v337 = vrot.slane %v336, 4
      %v338 = vadd.f32 %v336, %v337
      %v339 = vrot.slane %v338, 2
      %v340 = vadd.f32 %v338, %v339
      %v341 = vrot.slane %v340, 1
      %v342 = vadd.f32 %v340, %v341
      %v343 = vlog2.pop %v342
      %v344 = vmul.f32 %v343, 0.6931472
      %v345 = vlaneseq
      %v346 = vshrl.u32 %v345, 7
      %v347 = vsub.s32 0, %v346
      %v348 = vrot.slane %v324, %v347
      %vm349 = vcmp.eq.s32.totalorder %v206, %v348
      %v350 = vsel %vm349, %v333, 0.0
      %v351 = vsel %vm325, %v350, 0.0
      %v352 = vrot.slane %v351, 4
      %v353 = vadd.f32 %v351, %v352
      %v354 = vrot.slane %v353, 2
      %v355 = vadd.f32 %v353, %v354
      %v356 = vrot.slane %v355, 1
      %v357 = vadd.f32 %v355, %v356
      %vm358 = vcmp.ne.s32.totalorder %v324, 4294967196
      %v359 = vsub.f32 %v344, %v357
      %v360 = vsel %vm358, %v359, 0.0
      %v361 = vld [vmem:[#allocation4] sm:$0x1]
      %vm362 = vcmask 122880
      %v363 = vsel %vm362, %v360, 0.0
      %364 = vadd.xlane.f32.xlu0 %v363
      %v365 = vpop.xlane.xlu0 %364
      %v366 = vrot.slane %v365, 4
      %v367 = vadd.f32 %v365, %v366
      %v368 = vrot.slane %v367, 2
      %v369 = vadd.f32 %v367, %v368
      %v370 = vrot.slane %v369, 1
      %v371 = vadd.f32 %v369, %v370
      %s372 = vtos %v371
      %v373 = vstv %s372
      %v374 = vadd.f32 %v361, %v373
      %375 = vst.msk [vmem:[#allocation4] sm:$0x1] %vm237, %v374
      %v376 = vld [vmem:[#allocation7] sm:$0x1]
      %v377 = vsel %vm358, 1, 0
      %v378 = vcvt.s32.f32 %v377
      %v379 = vsel %vm362, %v378, 0.0
      %380 = vadd.xlane.f32.xlu0 %v379
      %v381 = vpop.xlane.xlu0 %380
      %v382 = vrot.slane %v381, 4
      %v383 = vadd.f32 %v381, %v382
      %v384 = vrot.slane %v383, 2
      %v385 = vadd.f32 %v383, %v384
      %v386 = vrot.slane %v385, 1
      %v387 = vadd.f32 %v385, %v386
      %s388 = vtos %v387
      %v389 = vstv %s388
      %v390 = vadd.f32 %v376, %v389
      %391 = vst.msk [vmem:[#allocation7] sm:$0x1] %vm237, %v390
    $region41: #{tpu_custom_call.1} parent=1 // pred_fallthru
      _
    // Predicated region
    $region42: #{tpu_custom_call.1} parent=1 // pred_check
      %p392 = pneg %p168
    $region43: #{tpu_custom_call.1} parent=1 // pred_check_branch
      %394 = sbr.rel (%p392) target = $region45
    $region44: #{tpu_custom_call.1} parent=1 // pred_region
      %v395 = vlaneseq
      %v396 = vand.u32 %v395, 127
      %vm397 = vcmp.eq.s32.totalorder %v396, 0
      %v398 = vld [vmem:[#allocation2] sm:$0x1]
      %vm399 = vcmp.eq.s32.totalorder %v396, 1
      %v400 = vld [vmem:[#allocation5] sm:$0x1]
      %402 = vset.pattern.permute.xlu0 0
      %403 = vperm.xlu0 %402, %v400
      %v404 = vpop.permute.xlu0 %403
      %v406 = vlaneseq
      %v407 = vshrl.u32 %v406, 7
      %v408 = vsub.s32 0, %v407
      %v409 = vrot.slane %v404, %v408
      %v410 = vsel %vm399, %v409, 0.0
      %412 = vset.pattern.permute.xlu0 0
      %413 = vperm.xlu0 %412, %v398
      %v414 = vpop.permute.xlu0 %413
      %v416 = vlaneseq
      %v417 = vshrl.u32 %v416, 7
      %v418 = vsub.s32 0, %v417
      %v419 = vrot.slane %v414, %v418
      %v420 = vsel %vm397, %v419, %v410
      %421 = vst [vmem:[#allocation13] sm:$0x1] %v420
      %v422 = vld [vmem:[#allocation3] sm:$0x1]
      %v423 = vld [vmem:[#allocation6] sm:$0x1]
      %425 = vset.pattern.permute.xlu0 0
      %426 = vperm.xlu0 %425, %v423
      %v427 = vpop.permute.xlu0 %426
      %v429 = vlaneseq
      %v430 = vshrl.u32 %v429, 7
      %v431 = vsub.s32 0, %v430
      %v432 = vrot.slane %v427, %v431
      %v433 = vsel %vm399, %v432, 0.0
      %435 = vset.pattern.permute.xlu0 0
      %436 = vperm.xlu0 %435, %v422
      %v437 = vpop.permute.xlu0 %436
      %v439 = vlaneseq
      %v440 = vshrl.u32 %v439, 7
      %v441 = vsub.s32 0, %v440
      %v442 = vrot.slane %v437, %v441
      %v443 = vsel %vm397, %v442, %v433
      %444 = vst [vmem:[#allocation14] sm:$0x1] %v443
      %v445 = vld [vmem:[#allocation4] sm:$0x1]
      %v446 = vld [vmem:[#allocation7] sm:$0x1]
      %448 = vset.pattern.permute.xlu0 0
      %449 = vperm.xlu0 %448, %v446
      %v450 = vpop.permute.xlu0 %449
      %v452 = vlaneseq
      %v453 = vshrl.u32 %v452, 7
      %v454 = vsub.s32 0, %v453
      %v455 = vrot.slane %v450, %v454
      %v456 = vsel %vm399, %v455, 0.0
      %458 = vset.pattern.permute.xlu0 0
      %459 = vperm.xlu0 %458, %v445
      %v460 = vpop.permute.xlu0 %459
      %v462 = vlaneseq
      %v463 = vshrl.u32 %v462, 7
      %v464 = vsub.s32 0, %v463
      %v465 = vrot.slane %v460, %v464
      %v466 = vsel %vm397, %v465, %v456
      %467 = vst [vmem:[#allocation16] sm:$0x1] %v466
    $region45: #{tpu_custom_call.1} parent=1 // pred_fallthru
      _
    // Predicated region
    $region46: #{tpu_custom_call.1} parent=1 // pred_check
      _
    $region47: #{tpu_custom_call.1} parent=1 // pred_check_branch
      %469 = sbr.rel (0) target = $region49
    $region48: #{tpu_custom_call.1} parent=1 // pred_region
      %s471 = ssub.s32 16, 16
      %472 = vsyncadd [#allocation10], %s471
      %s474 = sshll.u32 [#allocation13], 4
      %s475 = int_to_ptr.vmem [resolvable:$true] %s474
      %477 = dma.vmem_to_hbm [thread:$0]  %s475, 16, %s6, [#allocation10]
    $region49: #{tpu_custom_call.1} parent=1 // pred_fallthru
      _
    // Predicated region
    $region50: #{tpu_custom_call.1} parent=1 // pred_check
      _
    $region51: #{tpu_custom_call.1} parent=1 // pred_check_branch
      %479 = sbr.rel (0) target = $region53
    $region52: #{tpu_custom_call.1} parent=1 // pred_region
      %s481 = ssub.s32 16, 16
      %482 = vsyncadd [#allocation15], %s481
      %s484 = sshll.u32 [#allocation14], 4
      %s485 = int_to_ptr.vmem [resolvable:$true] %s484
      %487 = dma.vmem_to_hbm [thread:$0]  %s485, 16, %s7, [#allocation15]
    $region53: #{tpu_custom_call.1} parent=1 // pred_fallthru
      _
    // Predicated region
    $region54: #{tpu_custom_call.1} parent=1 // pred_check
      _
    $region55: #{tpu_custom_call.1} parent=1 // pred_check_branch
      %489 = sbr.rel (0) target = $region57
    $region56: #{tpu_custom_call.1} parent=1 // pred_region
      %s491 = ssub.s32 16, 16
      %492 = vsyncadd [#allocation15], %s491
      %s494 = sshll.u32 [#allocation16], 4
      %s495 = int_to_ptr.vmem [resolvable:$true] %s494
      %497 = dma.vmem_to_hbm [thread:$0]  %s495, 16, %s8, [#allocation15]
    $region57: #{tpu_custom_call.1} parent=1 // pred_fallthru
      _
    // Predicated region
    $region58: #{tpu_custom_call.1} parent=1 // pred_check
      _
    $region59: #{tpu_custom_call.1} parent=1 // pred_check_branch
      %499 = sbr.rel (0) target = $region61
    $region60: #{tpu_custom_call.1} parent=1 // pred_region
      %500 = dma.done [#allocation10], 16
    $region61: #{tpu_custom_call.1} parent=1 // pred_fallthru
      _
    // Predicated region
    $region62: #{tpu_custom_call.1} parent=1 // pred_check
      _
    $region63: #{tpu_custom_call.1} parent=1 // pred_check_branch
      %502 = sbr.rel (0) target = $region65
    $region64: #{tpu_custom_call.1} parent=1 // pred_region
      %503 = dma.done [#allocation15], 16
    $region65: #{tpu_custom_call.1} parent=1 // pred_fallthru
      _
    // Predicated region
    $region66: #{tpu_custom_call.1} parent=1 // pred_check
      _
    $region67: #{tpu_custom_call.1} parent=1 // pred_check_branch
      %505 = sbr.rel (0) target = $region69
    $region68: #{tpu_custom_call.1} parent=1 // pred_region
      %506 = dma.done [#allocation15], 16
    $region69: #{tpu_custom_call.1} parent=1 // pred_fallthru
      _
    %507 = vsyncpa [#allocation9], 1
    %508 = vsyncpa [#allocation12], 1
    %509 = vsyncpa [#allocation10], 1
    %510 = vsyncpa [#allocation15], 1

</llo_original>
